<compile_context>
chip_gen: v7x
topology: tpu7x:2x2x1
jax: 0.10.0
libtpu: 0.0.40
codegen_flags: <defaults>
</compile_context>

<pallas_src>
import jax
import jax.numpy as jnp
from jax.experimental import pallas as pl
from jax.experimental.pallas import tpu as pltpu


def _round_up(n, m):
    return ((n + m - 1) // m) * m


def _disc_kernel(x_ref, w1_ref, b1_ref, w2_ref, b2_ref,
                 w3_ref, b3_ref, w4_ref, b4_ref, o_ref):
    # Layer 1: (TB,135)@(135,128).  bf16 MXU inputs, f32 accumulate, f32 bias+ReLU.
    x = x_ref[...]
    if x.dtype != jnp.bfloat16:          # static at trace time; no-op when x arrives bf16
        x = x.astype(jnp.bfloat16)
    h = jnp.dot(x, w1_ref[...], preferred_element_type=jnp.float32)
    h = jnp.maximum(h + b1_ref[...], 0.0).astype(jnp.bfloat16)
    # Layer 2: (TB,128)@(128,128)
    h = jnp.dot(h, w2_ref[...], preferred_element_type=jnp.float32)
    h = jnp.maximum(h + b2_ref[...], 0.0).astype(jnp.bfloat16)
    # Layer 3: (TB,128)@(128,64)
    h = jnp.dot(h, w3_ref[...], preferred_element_type=jnp.float32)
    h = jnp.maximum(h + b3_ref[...], 0.0).astype(jnp.bfloat16)        # (TB, 64)
    # Layer 4 (lane-dense output): w4_ref is (8,64) with row 0 = real weights, rows 1..7 zero.
    # Contract the 64-feature axis of both operands (the q@k^T pattern) -> (8, TB).
    out8 = jax.lax.dot_general(
        w4_ref[...], h,
        dimension_numbers=(((1,), (1,)), ((), ())),
        preferred_element_type=jnp.float32)
    o_ref[...] = (out8[0:1, :] + b4_ref[...])[None, :, :]             # (1, 1, TB)


def discriminator_forward(x, params, *, block_rows=4096, use_core_parallel=False):
    """x: (B, 135) float32 or bfloat16.  params: w1..w4 stored (in,out) f32, b1..b4 (1,out) f32.
    Returns (B, 1) float32 (PyTorch layer semantics; bf16 MXU inputs / f32 accumulation)."""
    B, F = x.shape
    assert F == 135

    # Batch tile: always a multiple of 128 (lane-dense output, legal (8,128) blocks),
    # capped at 4096 for VMEM safety on v7x (64 MiB physical / 32 MiB scoped default).
    TB = _round_up(max(1, min(block_rows, B)), 128)
    TB = min(TB, 4096)
    if use_core_parallel:
        # Ensure at least 2 grid steps so both v7x TensorCores get work.
        TB = min(TB, _round_up(pl.cdiv(B, 2), 128))
    B_pad = _round_up(B, TB)
    if B_pad != B:
        x = jnp.pad(x, ((0, B_pad - B), (0, 0)))
    G = B_pad // TB

    bf16 = jnp.bfloat16
    w1 = params["w1"].astype(bf16)                                     # (135,128)
    w2 = params["w2"].astype(bf16)                                     # (128,128)
    w3 = params["w3"].astype(bf16)                                     # (128, 64)
    # Final-layer weights as an aligned 8-row block (row 0 real, rows 1..7 zero).
    w4 = jnp.pad(params["w4"].reshape(1, 64).astype(bf16), ((0, 7), (0, 0)))  # (8,64)
    b1, b2, b3, b4 = params["b1"], params["b2"], params["b3"], params["b4"]   # f32

    _const2 = lambda i: (0, 0)          # weights/biases: same block every grid step
    in_specs = [
        pl.BlockSpec((TB, 135), lambda i: (i, 0)),   # x tile (auto-pipelined over batch)
        pl.BlockSpec((135, 128), _const2),           # w1  (VMEM-resident)
        pl.BlockSpec((1, 128), _const2),             # b1
        pl.BlockSpec((128, 128), _const2),           # w2
        pl.BlockSpec((1, 128), _const2),             # b2
        pl.BlockSpec((128, 64), _const2),            # w3
        pl.BlockSpec((1, 64), _const2),              # b3
        pl.BlockSpec((8, 64), _const2),              # w4 (padded)
        pl.BlockSpec((1, 1), _const2),               # b4
    ]
    out_specs = pl.BlockSpec((1, 1, TB), lambda i: (i, 0, 0))

    # Scoped-VMEM budget: x is laid out as TB x 256 lanes in VMEM (135 pads to 2 vregs wide),
    # double-buffered; intermediates ~2 KiB/row peak; weights ~100 KiB.  Only raise the limit
    # when we actually need more than the conservative 16 MiB default (v5e).
    x_bytes = 2 if x.dtype == jnp.bfloat16 else 4
    vmem_est = 2 * TB * 256 * x_bytes + TB * 2048 + (4 << 20)
    vmem_limit = min(int(vmem_est), 48 << 20) if vmem_est > (16 << 20) else None

    dim_sem = (pltpu.CORE_PARALLEL,) if use_core_parallel else ("parallel",)

    flops = 2 * B_pad * (135 * 128 + 128 * 128 + 128 * 64 + 8 * 64)
    bytes_accessed = (B_pad * 135 * x_bytes                                # x
                      + (135 * 128 + 128 * 128 + 128 * 64 + 8 * 64) * 2    # bf16 weights
                      + (128 + 128 + 64 + 1) * 4                           # f32 biases
                      + B_pad * 4)                                         # output

    out = pl.pallas_call(
        _disc_kernel,
        out_shape=jax.ShapeDtypeStruct((G, 1, TB), jnp.float32),
        grid=(G,),
        in_specs=in_specs,
        out_specs=out_specs,
        compiler_params=pltpu.CompilerParams(
            dimension_semantics=dim_sem,
            vmem_limit_bytes=vmem_limit),
        cost_estimate=pl.CostEstimate(
            flops=int(flops), transcendentals=0, bytes_accessed=int(bytes_accessed)),
    )(x, w1, b1, w2, b2, w3, b3, w4, b4)

    # (G, 1, TB) lane-dense layout -> (B, 1); padded rows (bias-propagated junk) are dropped.
    return out.reshape(B_pad)[:B].reshape(B, 1)


def init_params(key):
    """Deterministic synthetic init matching nn.Linear shapes (stored as (in, out))."""
    sizes = [(135, 128), (128, 128), (128, 64), (64, 1)]
    params = {}
    keys = jax.random.split(key, 2 * len(sizes))
    for i, (fan_in, fan_out) in enumerate(sizes):
        bound = 1.0 / jnp.sqrt(fan_in)  # PyTorch default uniform(-1/sqrt(in), 1/sqrt(in))
        params[f"w{i+1}"] = jax.random.uniform(
            keys[2 * i], (fan_in, fan_out), jnp.float32, -bound, bound)
        params[f"b{i+1}"] = jax.random.uniform(
            keys[2 * i + 1], (1, fan_out), jnp.float32, -bound, bound)
    return params


def _reference_forward_f32(x, p):
    h = jnp.maximum(x @ p["w1"] + p["b1"], 0.0)
    h = jnp.maximum(h @ p["w2"] + p["b2"], 0.0)
    h = jnp.maximum(h @ p["w3"] + p["b3"], 0.0)
    return h @ p["w4"] + p["b4"]


def _reference_forward_bf16(x, p):
    bf16, f32 = jnp.bfloat16, jnp.float32
    h = jnp.maximum(jnp.dot(x.astype(bf16), p["w1"].astype(bf16),
                            preferred_element_type=f32) + p["b1"], 0.0)
    h = jnp.maximum(jnp.dot(h.astype(bf16), p["w2"].astype(bf16),
                            preferred_element_type=f32) + p["b2"], 0.0)
    h = jnp.maximum(jnp.dot(h.astype(bf16), p["w3"].astype(bf16),
                            preferred_element_type=f32) + p["b3"], 0.0)
    return jnp.dot(h.astype(bf16), p["w4"].astype(bf16),
                   preferred_element_type=f32) + p["b4"]


if __name__ == "__main__":
    key = jax.random.PRNGKey(0)
    k_params, k_x, k_x2 = jax.random.split(key, 3)
    params = init_params(k_params)

    # Small single-tile case (TB rounds up to 128, padded batch).
    B = 64
    x = jax.random.normal(k_x, (B, 135), dtype=jnp.float32)

    fwd = jax.jit(discriminator_forward)
    out = jax.block_until_ready(fwd(x, params))
    assert out.shape == (B, 1)

    ref_bf16 = _reference_forward_bf16(x, params)   # same bf16-MXU-input math
    ref_f32 = _reference_forward_f32(x, params)     # exact PyTorch f32 semantics
    assert jnp.allclose(out, ref_bf16, atol=1e-2, rtol=1e-2), "mismatch vs bf16-matched reference"
    assert jnp.allclose(out, ref_f32, atol=5e-2, rtol=5e-2), "mismatch vs f32 reference"

    # Multi-tile case (exercises the pipelined grid + rounding of a non-multiple block_rows).
    B2 = 300
    x2 = jax.random.normal(k_x2, (B2, 135), dtype=jnp.float32)
    out2 = jax.block_until_ready(discriminator_forward(x2, params, block_rows=100))
    assert out2.shape == (B2, 1)
    assert jnp.allclose(out2, _reference_forward_bf16(x2, params), atol=1e-2, rtol=1e-2), \
        "mismatch on multi-tile path"

    # bf16-input fast path (producer-side bf16 x; halves the HBM stream).
    out3 = jax.block_until_ready(discriminator_forward(x.astype(jnp.bfloat16), params))
    assert out3.shape == (B, 1)
    assert jnp.allclose(out3, ref_bf16, atol=2e-2, rtol=2e-2), "mismatch on bf16-x path"

    print("KERNEL_OK")
</pallas_src>

<mosaic_0001>
module attributes {stable_mosaic.version = 11 : i64} {
  func.func @_disc_kernel(%arg0: i32, %arg1: memref<128x135xf32, #tpu.memory_space<vmem>>, %arg2: memref<135x128xbf16, #tpu.memory_space<vmem>>, %arg3: memref<1x128xf32, #tpu.memory_space<vmem>>, %arg4: memref<128x128xbf16, #tpu.memory_space<vmem>>, %arg5: memref<1x128xf32, #tpu.memory_space<vmem>>, %arg6: memref<128x64xbf16, #tpu.memory_space<vmem>>, %arg7: memref<1x64xf32, #tpu.memory_space<vmem>>, %arg8: memref<8x64xbf16, #tpu.memory_space<vmem>>, %arg9: memref<1x1xf32, #tpu.memory_space<vmem>>, %arg10: memref<1x1x128xf32, #tpu.memory_space<vmem>>) attributes {dimension_semantics = [#tpu.dimension_semantics<parallel>], iteration_bounds = array<i64: 1>, scalar_prefetch = 0 : i64, scratch_operands = 0 : i64, tpu.core_type = #tpu.core_type<tc>, window_params = [{transform_indices = @transform_0, window_bounds = array<i64: 128, 135>}, {pipeline_mode = #tpu.pipeline_mode<synchronous>, transform_indices = @transform_1, window_bounds = array<i64: 135, 128>}, {pipeline_mode = #tpu.pipeline_mode<synchronous>, transform_indices = @transform_2, window_bounds = array<i64: 1, 128>}, {pipeline_mode = #tpu.pipeline_mode<synchronous>, transform_indices = @transform_3, window_bounds = array<i64: 128, 128>}, {pipeline_mode = #tpu.pipeline_mode<synchronous>, transform_indices = @transform_4, window_bounds = array<i64: 1, 128>}, {pipeline_mode = #tpu.pipeline_mode<synchronous>, transform_indices = @transform_5, window_bounds = array<i64: 128, 64>}, {pipeline_mode = #tpu.pipeline_mode<synchronous>, transform_indices = @transform_6, window_bounds = array<i64: 1, 64>}, {pipeline_mode = #tpu.pipeline_mode<synchronous>, transform_indices = @transform_7, window_bounds = array<i64: 8, 64>}, {pipeline_mode = #tpu.pipeline_mode<synchronous>, transform_indices = @transform_8, window_bounds = array<i64: 1, 1>}, {transform_indices = @transform_9, window_bounds = array<i64: 1, 1, 128>}]} {
    %c0 = arith.constant 0 : index
    %c0_0 = arith.constant 0 : index
    %0 = vector.load %arg1[%c0, %c0_0] : memref<128x135xf32, #tpu.memory_space<vmem>>, vector<128x135xf32>
    %1 = arith.truncf %0 : vector<128x135xf32> to vector<128x135xbf16>
    %c0_1 = arith.constant 0 : index
    %c0_2 = arith.constant 0 : index
    %2 = vector.load %arg2[%c0_1, %c0_2] : memref<135x128xbf16, #tpu.memory_space<vmem>>, vector<135x128xbf16>
    %cst = arith.constant dense<0.000000e+00> : vector<128x128xf32>
    %3 = tpu.matmul %1, %2, %cst {dimension_numbers = #tpu.dot_dimension_numbers<[1], [0], [0], [1], [0, 0, 1, 1], [], []>} : vector<128x135xbf16>, vector<135x128xbf16>, vector<128x128xf32> -> vector<128x128xf32>
    %c0_3 = arith.constant 0 : index
    %c0_4 = arith.constant 0 : index
    %4 = vector.load %arg3[%c0_3, %c0_4] : memref<1x128xf32, #tpu.memory_space<vmem>>, vector<1x128xf32>
    %5 = vector.broadcast %4 : vector<1x128xf32> to vector<128x128xf32>
    %6 = arith.addf %3, %5 : vector<128x128xf32>
    %cst_5 = arith.constant 0.000000e+00 : f32
    %7 = vector.broadcast %cst_5 : f32 to vector<128x128xf32>
    %8 = arith.maximumf %6, %7 : vector<128x128xf32>
    %9 = arith.truncf %8 : vector<128x128xf32> to vector<128x128xbf16>
    %c0_6 = arith.constant 0 : index
    %c0_7 = arith.constant 0 : index
    %10 = vector.load %arg4[%c0_6, %c0_7] : memref<128x128xbf16, #tpu.memory_space<vmem>>, vector<128x128xbf16>
    %cst_8 = arith.constant dense<0.000000e+00> : vector<128x128xf32>
    %11 = tpu.matmul %9, %10, %cst_8 {dimension_numbers = #tpu.dot_dimension_numbers<[1], [0], [0], [1], [0, 0, 1, 1], [], []>} : vector<128x128xbf16>, vector<128x128xbf16>, vector<128x128xf32> -> vector<128x128xf32>
    %c0_9 = arith.constant 0 : index
    %c0_10 = arith.constant 0 : index
    %12 = vector.load %arg5[%c0_9, %c0_10] : memref<1x128xf32, #tpu.memory_space<vmem>>, vector<1x128xf32>
    %13 = vector.broadcast %12 : vector<1x128xf32> to vector<128x128xf32>
    %14 = arith.addf %11, %13 : vector<128x128xf32>
    %cst_11 = arith.constant 0.000000e+00 : f32
    %15 = vector.broadcast %cst_11 : f32 to vector<128x128xf32>
    %16 = arith.maximumf %14, %15 : vector<128x128xf32>
    %17 = arith.truncf %16 : vector<128x128xf32> to vector<128x128xbf16>
    %c0_12 = arith.constant 0 : index
    %c0_13 = arith.constant 0 : index
    %18 = vector.load %arg6[%c0_12, %c0_13] : memref<128x64xbf16, #tpu.memory_space<vmem>>, vector<128x64xbf16>
    %cst_14 = arith.constant dense<0.000000e+00> : vector<128x64xf32>
    %19 = tpu.matmul %17, %18, %cst_14 {dimension_numbers = #tpu.dot_dimension_numbers<[1], [0], [0], [1], [0, 0, 1, 1], [], []>} : vector<128x128xbf16>, vector<128x64xbf16>, vector<128x64xf32> -> vector<128x64xf32>
    %c0_15 = arith.constant 0 : index
    %c0_16 = arith.constant 0 : index
    %20 = vector.load %arg7[%c0_15, %c0_16] : memref<1x64xf32, #tpu.memory_space<vmem>>, vector<1x64xf32>
    %21 = vector.broadcast %20 : vector<1x64xf32> to vector<128x64xf32>
    %22 = arith.addf %19, %21 : vector<128x64xf32>
    %cst_17 = arith.constant 0.000000e+00 : f32
    %23 = vector.broadcast %cst_17 : f32 to vector<128x64xf32>
    %24 = arith.maximumf %22, %23 : vector<128x64xf32>
    %25 = arith.truncf %24 : vector<128x64xf32> to vector<128x64xbf16>
    %c0_18 = arith.constant 0 : index
    %c0_19 = arith.constant 0 : index
    %26 = vector.load %arg8[%c0_18, %c0_19] : memref<8x64xbf16, #tpu.memory_space<vmem>>, vector<8x64xbf16>
    %cst_20 = arith.constant dense<0.000000e+00> : vector<8x128xf32>
    %27 = tpu.matmul %26, %25, %cst_20 {dimension_numbers = #tpu.dot_dimension_numbers<[1], [1], [0], [0], [0, 0, 1, 0], [], []>} : vector<8x64xbf16>, vector<128x64xbf16>, vector<8x128xf32> -> vector<8x128xf32>
    %28 = vector.extract_strided_slice %27 {offsets = [0, 0], sizes = [1, 128], strides = [1, 1]} : vector<8x128xf32> to vector<1x128xf32>
    %c0_21 = arith.constant 0 : index
    %c0_22 = arith.constant 0 : index
    %29 = vector.load %arg9[%c0_21, %c0_22] : memref<1x1xf32, #tpu.memory_space<vmem>>, vector<1x1xf32>
    %30 = vector.broadcast %29 : vector<1x1xf32> to vector<1x128xf32>
    %31 = arith.addf %28, %30 : vector<1x128xf32>
    %32 = vector.shape_cast %31 : vector<1x128xf32> to vector<1x1x128xf32>
    %c0_23 = arith.constant 0 : index
    %c0_24 = arith.constant 0 : index
    %c0_25 = arith.constant 0 : index
    %33 = vector.load %arg10[%c0_23, %c0_24, %c0_25] : memref<1x1x128xf32, #tpu.memory_space<vmem>>, vector<1x1x128xf32>
    tpu.vector_store %arg10[%c0_23, %c0_24, %c0_25], %32 {strides = array<i32>} : memref<1x1x128xf32, #tpu.memory_space<vmem>>, vector<1x1x128xf32>,
    return
  }
  func.func @transform_0(%arg0: i32) -> (i32, i32) {
    %c0_i32 = arith.constant 0 : i32
    %c0_i32_0 = arith.constant 0 : i32
    return %arg0, %c0_i32 : i32, i32
  }
  func.func @transform_1(%arg0: i32) -> (i32, i32) {
    %c0_i32 = arith.constant 0 : i32
    %c0_i32_0 = arith.constant 0 : i32
    %c0_i32_1 = arith.constant 0 : i32
    return %c0_i32, %c0_i32_0 : i32, i32
  }
  func.func @transform_2(%arg0: i32) -> (i32, i32) {
    %c0_i32 = arith.constant 0 : i32
    %c0_i32_0 = arith.constant 0 : i32
    %c0_i32_1 = arith.constant 0 : i32
    return %c0_i32, %c0_i32_0 : i32, i32
  }
  func.func @transform_3(%arg0: i32) -> (i32, i32) {
    %c0_i32 = arith.constant 0 : i32
    %c0_i32_0 = arith.constant 0 : i32
    %c0_i32_1 = arith.constant 0 : i32
    return %c0_i32, %c0_i32_0 : i32, i32
  }
  func.func @transform_4(%arg0: i32) -> (i32, i32) {
    %c0_i32 = arith.constant 0 : i32
    %c0_i32_0 = arith.constant 0 : i32
    %c0_i32_1 = arith.constant 0 : i32
    return %c0_i32, %c0_i32_0 : i32, i32
  }
  func.func @transform_5(%arg0: i32) -> (i32, i32) {
    %c0_i32 = arith.constant 0 : i32
    %c0_i32_0 = arith.constant 0 : i32
    %c0_i32_1 = arith.constant 0 : i32
    return %c0_i32, %c0_i32_0 : i32, i32
  }
  func.func @transform_6(%arg0: i32) -> (i32, i32) {
    %c0_i32 = arith.constant 0 : i32
    %c0_i32_0 = arith.constant 0 : i32
    %c0_i32_1 = arith.constant 0 : i32
    return %c0_i32, %c0_i32_0 : i32, i32
  }
  func.func @transform_7(%arg0: i32) -> (i32, i32) {
    %c0_i32 = arith.constant 0 : i32
    %c0_i32_0 = arith.constant 0 : i32
    %c0_i32_1 = arith.constant 0 : i32
    return %c0_i32, %c0_i32_0 : i32, i32
  }
  func.func @transform_8(%arg0: i32) -> (i32, i32) {
    %c0_i32 = arith.constant 0 : i32
    %c0_i32_0 = arith.constant 0 : i32
    %c0_i32_1 = arith.constant 0 : i32
    return %c0_i32, %c0_i32_0 : i32, i32
  }
  func.func @transform_9(%arg0: i32) -> (i32, i32, i32) {
    %c0_i32 = arith.constant 0 : i32
    %c0_i32_0 = arith.constant 0 : i32
    %c0_i32_1 = arith.constant 0 : i32
    return %arg0, %c0_i32, %c0_i32_0 : i32, i32, i32
  }
}

</mosaic_0001>

<llo_original>
// kernel: discriminator_forward.1
$region0: #{discriminator_forward.1}
  #allocation0 [shape = 'u32[]', space=smem, size = 0x4, offset = 0x4, fixed_abs, tag = 'smem constant byte address 0x4 - core index']
  #allocation1 [shape = 'u32[144,128]{1,0:T(1,128)}', space=vmem, size = 0x12000, scoped, tag = 'internal scratch']
  #allocation2 [shape = 'f32[1,1]{1,0:T(1,128)S(1)}', space=vmem, size = 0x200, scoped, tag = 'scoped memory for discriminator_forward.1']
  %s0 = inlined_call_operand.vmem [shape: f32[128,135], index: 0, kind: input, shape index: {}]
  %s1 = inlined_call_operand.vmem [shape: bf16[135,128], index: 1, kind: input, shape index: {}]
  %s2 = inlined_call_operand.vmem [shape: f32[1,128], index: 2, kind: input, shape index: {}]
  %s3 = inlined_call_operand.vmem [shape: bf16[128,128], index: 3, kind: input, shape index: {}]
  %s4 = inlined_call_operand.vmem [shape: f32[1,128], index: 4, kind: input, shape index: {}]
  %s5 = inlined_call_operand.vmem [shape: bf16[128,64], index: 5, kind: input, shape index: {}]
  %s6 = inlined_call_operand.vmem [shape: f32[1,64], index: 6, kind: input, shape index: {}]
  %s7 = inlined_call_operand.vmem [shape: bf16[8,64], index: 7, kind: input, shape index: {}]
  %s8 = inlined_call_operand.<no memory space> [shape: f32[1,1], index: 8, kind: input, shape index: {}]
  %s9 = inlined_call_operand.vmem [shape: f32[1,1,128], index: 9, kind: output, shape index: {}]
  %s10 = sld [smem:[#allocation0]]
  $region46: #{discriminator_forward.1} parent=0
    _
  %s12 = ssub.s32 1, %s10
  %s13 = scalar_select 0, %s12, %s10
  %v14 = vstv %s8
  %15 = vst [vmem:[#allocation2] sm:$0x1] %v14
  // Predicated region
  $region2: #{discriminator_forward.1} parent=0 // pred_check
    _
  $region3: #{discriminator_forward.1} parent=0 // pred_check_branch
    %17 = sbr.rel (0) target = $region5
  $region4: #{discriminator_forward.1} parent=0 // pred_region
    _
  $region5: #{discriminator_forward.1} parent=0 // pred_fallthru
    _
  // Predicated region
  $region6: #{discriminator_forward.1} parent=0 // pred_check
    _
  $region7: #{discriminator_forward.1} parent=0 // pred_check_branch
    %19 = sbr.rel (0) target = $region9
  $region8: #{discriminator_forward.1} parent=0 // pred_region
    _
  $region9: #{discriminator_forward.1} parent=0 // pred_fallthru
    _
  // Predicated region
  $region10: #{discriminator_forward.1} parent=0 // pred_check
    _
  $region11: #{discriminator_forward.1} parent=0 // pred_check_branch
    %21 = sbr.rel (0) target = $region13
  $region12: #{discriminator_forward.1} parent=0 // pred_region
    _
  $region13: #{discriminator_forward.1} parent=0 // pred_fallthru
    _
  // Predicated region
  $region14: #{discriminator_forward.1} parent=0 // pred_check
    _
  $region15: #{discriminator_forward.1} parent=0 // pred_check_branch
    %23 = sbr.rel (0) target = $region17
  $region16: #{discriminator_forward.1} parent=0 // pred_region
    _
  $region17: #{discriminator_forward.1} parent=0 // pred_fallthru
    _
  // Predicated region
  $region18: #{discriminator_forward.1} parent=0 // pred_check
    _
  $region19: #{discriminator_forward.1} parent=0 // pred_check_branch
    %25 = sbr.rel (0) target = $region21
  $region20: #{discriminator_forward.1} parent=0 // pred_region
    _
  $region21: #{discriminator_forward.1} parent=0 // pred_fallthru
    _
  // Predicated region
  $region22: #{discriminator_forward.1} parent=0 // pred_check
    _
  $region23: #{discriminator_forward.1} parent=0 // pred_check_branch
    %27 = sbr.rel (0) target = $region25
  $region24: #{discriminator_forward.1} parent=0 // pred_region
    _
  $region25: #{discriminator_forward.1} parent=0 // pred_fallthru
    _
  // Predicated region
  $region26: #{discriminator_forward.1} parent=0 // pred_check
    _
  $region27: #{discriminator_forward.1} parent=0 // pred_check_branch
    %29 = sbr.rel (0) target = $region29
  $region28: #{discriminator_forward.1} parent=0 // pred_region
    _
  $region29: #{discriminator_forward.1} parent=0 // pred_fallthru
    _
  // Predicated region
  $region30: #{discriminator_forward.1} parent=0 // pred_check
    _
  $region31: #{discriminator_forward.1} parent=0 // pred_check_branch
    %31 = sbr.rel (0) target = $region33
  $region32: #{discriminator_forward.1} parent=0 // pred_region
    _
  $region33: #{discriminator_forward.1} parent=0 // pred_fallthru
    _
  // Predicated region
  $region34: #{discriminator_forward.1} parent=0 // pred_check
    _
  $region35: #{discriminator_forward.1} parent=0 // pred_check_branch
    %33 = sbr.rel (0) target = $region37
  $region36: #{discriminator_forward.1} parent=0 // pred_region
    _
  $region37: #{discriminator_forward.1} parent=0 // pred_fallthru
    _
  %v35 = vld [vmem:[%s0] sm:$0xff]
  %v36 = vld [vmem:[%s0 + $0x8] sm:$0xff]
  %v37 = vld [vmem:[%s0 + $0x10] sm:$0xff]
  %v38 = vld [vmem:[%s0 + $0x18] sm:$0xff]
  %v39 = vld [vmem:[%s0 + $0x20] sm:$0xff]
  %v40 = vld [vmem:[%s0 + $0x28] sm:$0xff]
  %v41 = vld [vmem:[%s0 + $0x30] sm:$0xff]
  %v42 = vld [vmem:[%s0 + $0x38] sm:$0xff]
  %v43 = vld [vmem:[%s0 + $0x40] sm:$0xff]
  %v44 = vld [vmem:[%s0 + $0x48] sm:$0xff]
  %v45 = vld [vmem:[%s0 + $0x50] sm:$0xff]
  %v46 = vld [vmem:[%s0 + $0x58] sm:$0xff]
  %v47 = vld [vmem:[%s0 + $0x60] sm:$0xff]
  %v48 = vld [vmem:[%s0 + $0x68] sm:$0xff]
  %v49 = vld [vmem:[%s0 + $0x70] sm:$0xff]
  %v50 = vld [vmem:[%s0 + $0x78] sm:$0xff]
  %v51 = vld [vmem:[%s0 + $0x80] sm:$0xff]
  %v52 = vld [vmem:[%s0 + $0x88] sm:$0xff]
  %v53 = vld [vmem:[%s0 + $0x90] sm:$0xff]
  %v54 = vld [vmem:[%s0 + $0x98] sm:$0xff]
  %v55 = vld [vmem:[%s0 + $0xa0] sm:$0xff]
  %v56 = vld [vmem:[%s0 + $0xa8] sm:$0xff]
  %v57 = vld [vmem:[%s0 + $0xb0] sm:$0xff]
  %v58 = vld [vmem:[%s0 + $0xb8] sm:$0xff]
  %v59 = vld [vmem:[%s0 + $0xc0] sm:$0xff]
  %v60 = vld [vmem:[%s0 + $0xc8] sm:$0xff]
  %v61 = vld [vmem:[%s0 + $0xd0] sm:$0xff]
  %v62 = vld [vmem:[%s0 + $0xd8] sm:$0xff]
  %v63 = vld [vmem:[%s0 + $0xe0] sm:$0xff]
  %v64 = vld [vmem:[%s0 + $0xe8] sm:$0xff]
  %v65 = vld [vmem:[%s0 + $0xf0] sm:$0xff]
  %v66 = vld [vmem:[%s0 + $0xf8] sm:$0xff]
  %v67 = vpack.c.bf16 %v37, %v35
  %v68 = vpack.c.bf16 %v38, %v36
  %v69 = vpack.c.bf16 %v41, %v39
  %v70 = vpack.c.bf16 %v42, %v40
  %v71 = vpack.c.bf16 %v45, %v43
  %v72 = vpack.c.bf16 %v46, %v44
  %v73 = vpack.c.bf16 %v49, %v47
  %v74 = vpack.c.bf16 %v50, %v48
  %v75 = vpack.c.bf16 %v53, %v51
  %v76 = vpack.c.bf16 %v54, %v52
  %v77 = vpack.c.bf16 %v57, %v55
  %v78 = vpack.c.bf16 %v58, %v56
  %v79 = vpack.c.bf16 %v61, %v59
  %v80 = vpack.c.bf16 %v62, %v60
  %v81 = vpack.c.bf16 %v65, %v63
  %v82 = vpack.c.bf16 %v66, %v64
  %v83 = vld [vmem:[%s1] sm:$0xf]
  %v84 = vld [vmem:[%s1 + $0x4] sm:$0xf]
  %v85 = vld [vmem:[%s1 + $0x8] sm:$0xf]
  %v86 = vld [vmem:[%s1 + $0xc] sm:$0xf]
  %v87 = vld [vmem:[%s1 + $0x10] sm:$0xf]
  %v88 = vld [vmem:[%s1 + $0x14] sm:$0xf]
  %v89 = vld [vmem:[%s1 + $0x18] sm:$0xf]
  %v90 = vld [vmem:[%s1 + $0x1c] sm:$0xf]
  %v91 = vld [vmem:[%s1 + $0x20] sm:$0xf]
  %v92 = vld [vmem:[%s1 + $0x24] sm:$0xf]
  %v93 = vld [vmem:[%s1 + $0x28] sm:$0xf]
  %v94 = vld [vmem:[%s1 + $0x2c] sm:$0xf]
  %v95 = vld [vmem:[%s1 + $0x30] sm:$0xf]
  %v96 = vld [vmem:[%s1 + $0x34] sm:$0xf]
  %v97 = vld [vmem:[%s1 + $0x38] sm:$0xf]
  %v98 = vld [vmem:[%s1 + $0x3c] sm:$0xf]
  %v99 = vld [vmem:[%s1 + $0x40] sm:$0xf]
  %v100 = vld [vmem:[%s2] sm:$0x1]
  %v102 = vlaneseq
  %v103 = vshrl.u32 %v102, 7
  %v104 = vsub.s32 0, %v103
  %v105 = vrot.slane %v100, %v104
  %v124 = vunpack.c.l.b16 %v83
  %v125 = vunpack.c.l.b16 %v84
  %v126 = vunpack.c.l.b16 %v85
  %v127 = vunpack.c.l.b16 %v86
  %v128 = vunpack.c.l.b16 %v87
  %v129 = vunpack.c.l.b16 %v88
  %v130 = vunpack.c.l.b16 %v89
  %v131 = vunpack.c.l.b16 %v90
  %v132 = vunpack.c.l.b16 %v91
  %v133 = vunpack.c.l.b16 %v92
  %v134 = vunpack.c.l.b16 %v93
  %v135 = vunpack.c.l.b16 %v94
  %v136 = vunpack.c.l.b16 %v95
  %v137 = vunpack.c.l.b16 %v96
  %v138 = vunpack.c.l.b16 %v97
  %v139 = vunpack.c.l.b16 %v98
  %v140 = vunpack.c.l.b16 %v99
  %v141 = vpack.c.b16 %v125, %v124
  %v142 = vpack.c.b16 %v127, %v126
  %v143 = vpack.c.b16 %v129, %v128
  %v144 = vpack.c.b16 %v131, %v130
  %v145 = vpack.c.b16 %v133, %v132
  %v146 = vpack.c.b16 %v135, %v134
  %v147 = vpack.c.b16 %v137, %v136
  %v148 = vpack.c.b16 %v139, %v138
  %v149 = vpack.c.b16 %v140, %v140
  %vm158 = vcmask 56320
  %v160 = vsel %vm158, %v68, 0
  %v163 = vsel %vm158, %v70, 0
  %v166 = vsel %vm158, %v72, 0
  %v169 = vsel %vm158, %v74, 0
  %v172 = vsel %vm158, %v76, 0
  %v175 = vsel %vm158, %v78, 0
  %v178 = vsel %vm158, %v80, 0
  %v181 = vsel %vm158, %v82, 0
  %vm183 = vcmask 1042432
  %vm184 = vcmask 1043456
  %v185 = vsel %vm183, 4294967295, 65535
  %v186 = vsel %vm184, %v185, 0
  %v188 = vand.u32 %v149, %v186
  %190 = vmatprep.subr.bf16.mxu0 0
  %191 = vmatpush1.bf16.msra.mxu0 %v141
  %192 = vmatprep.subr.bf16.mxu0 0
  %193 = vmatpush1.bf16.msra.mxu0 %v142
  %194 = vmatprep.subr.bf16.mxu0 0
  %195 = vmatpush1.bf16.msra.mxu0 %v143
  %196 = vmatprep.subr.bf16.mxu0 0
  %197 = vmatpush1.bf16.msra.mxu0 %v144
  %198 = vmatprep.subr.bf16.mxu0 0
  %199 = vmatpush1.bf16.msra.mxu0 %v145
  %200 = vmatprep.subr.bf16.mxu0 0
  %201 = vmatpush1.bf16.msra.mxu0 %v146
  %202 = vmatprep.subr.bf16.mxu0 0
  %203 = vmatpush1.bf16.msra.mxu0 %v147
  %204 = vmatprep.subr.bf16.mxu0 0
  %205 = vmatpush1.bf16.msra.mxu0 %v148
  %206 = vmatprep.subr.bf16.mxu0 0
  %207 = vmatpush1.bf16.msra.mxu0 %v188
  %208 = vmatprep.subr.bf16.mxu0 0
  %209 = vmatpush1.bf16.msra.mxu0 0
  %210 = vmatprep.subr.bf16.mxu0 0
  %211 = vmatpush1.bf16.msra.mxu0 0
  %212 = vmatprep.subr.bf16.mxu0 0
  %213 = vmatpush1.bf16.msra.mxu0 0
  %214 = vmatprep.subr.bf16.mxu0 0
  %215 = vmatpush1.bf16.msra.mxu0 0
  %216 = vmatprep.subr.bf16.mxu0 0
  %217 = vmatpush1.bf16.msra.mxu0 0
  %218 = vmatprep.subr.bf16.mxu0 0
  %219 = vmatpush1.bf16.msra.mxu0 0
  %220 = vmatprep.subr.bf16.mxu0 0
  %221 = vmatpush1.bf16.msra.mxu0 0
  %222 = vmatprep.mubr.bf16.mxu0 %v160
  %223 = vmatmul.mubr.bf16.gmra.mrb[0].mxu0 %v67
  %v224 = vpop.f32.mrb[0].mxu0
  %v225 = vadd.f32 %v105, %v224
  %v226 = vpop.f32.mrb[0].mxu0
  %v227 = vpop.f32.mrb[0].mxu0
  %v228 = vadd.f32 %v105, %v227
  %v229 = vpop.f32.mrb[0].mxu0
  %230 = vmatprep.mubr.bf16.mxu0 %v163
  %231 = vmatmul.mubr.bf16.gmra.mrb[0].mxu0 %v69
  %v232 = vpop.f32.mrb[0].mxu0
  %v233 = vadd.f32 %v105, %v232
  %v234 = vpop.f32.mrb[0].mxu0
  %v235 = vpop.f32.mrb[0].mxu0
  %v236 = vadd.f32 %v105, %v235
  %v237 = vpop.f32.mrb[0].mxu0
  %238 = vmatprep.mubr.bf16.mxu0 %v166
  %239 = vmatmul.mubr.bf16.gmra.mrb[0].mxu0 %v71
  %v240 = vpop.f32.mrb[0].mxu0
  %v241 = vadd.f32 %v105, %v240
  %v242 = vpop.f32.mrb[0].mxu0
  %v243 = vpop.f32.mrb[0].mxu0
  %v244 = vadd.f32 %v105, %v243
  %v245 = vpop.f32.mrb[0].mxu0
  %246 = vmatprep.mubr.bf16.mxu0 %v169
  %247 = vmatmul.mubr.bf16.gmra.mrb[0].mxu0 %v73
  %v248 = vpop.f32.mrb[0].mxu0
  %v249 = vadd.f32 %v105, %v248
  %v250 = vpop.f32.mrb[0].mxu0
  %v251 = vpop.f32.mrb[0].mxu0
  %v252 = vadd.f32 %v105, %v251
  %v253 = vpop.f32.mrb[0].mxu0
  %254 = vmatprep.mubr.bf16.mxu0 %v172
  %255 = vmatmul.mubr.bf16.gmra.mrb[0].mxu0 %v75
  %v256 = vpop.f32.mrb[0].mxu0
  %v257 = vadd.f32 %v105, %v256
  %v258 = vpop.f32.mrb[0].mxu0
  %v259 = vpop.f32.mrb[0].mxu0
  %v260 = vadd.f32 %v105, %v259
  %v261 = vpop.f32.mrb[0].mxu0
  %262 = vmatprep.mubr.bf16.mxu0 %v175
  %263 = vmatmul.mubr.bf16.gmra.mrb[0].mxu0 %v77
  %v264 = vpop.f32.mrb[0].mxu0
  %v265 = vadd.f32 %v105, %v264
  %v266 = vpop.f32.mrb[0].mxu0
  %v267 = vpop.f32.mrb[0].mxu0
  %v268 = vadd.f32 %v105, %v267
  %v269 = vpop.f32.mrb[0].mxu0
  %270 = vmatprep.mubr.bf16.mxu0 %v178
  %271 = vmatmul.mubr.bf16.gmra.mrb[0].mxu0 %v79
  %v272 = vpop.f32.mrb[0].mxu0
  %v273 = vadd.f32 %v105, %v272
  %v274 = vpop.f32.mrb[0].mxu0
  %v275 = vpop.f32.mrb[0].mxu0
  %v276 = vadd.f32 %v105, %v275
  %v277 = vpop.f32.mrb[0].mxu0
  %278 = vmatprep.mubr.bf16.mxu0 %v181
  %279 = vmatmul.mubr.bf16.gmra.mrb[0].mxu0 %v81
  %v280 = vpop.f32.mrb[0].mxu0
  %v281 = vadd.f32 %v105, %v280
  %v282 = vpop.f32.mrb[0].mxu0
  %v283 = vpop.f32.mrb[0].mxu0
  %v284 = vadd.f32 %v105, %v283
  %v285 = vpop.f32.mrb[0].mxu0
  %286 = vdwg.mxu0
  %v287 = vmax.f32 %v225, 0.0
  %v288 = vmax.f32 %v228, 0.0
  %v289 = vmax.f32 %v233, 0.0
  %v290 = vmax.f32 %v236, 0.0
  %v291 = vmax.f32 %v241, 0.0
  %v292 = vmax.f32 %v244, 0.0
  %v293 = vmax.f32 %v249, 0.0
  %v294 = vmax.f32 %v252, 0.0
  %v295 = vmax.f32 %v257, 0.0
  %v296 = vmax.f32 %v260, 0.0
  %v297 = vmax.f32 %v265, 0.0
  %v298 = vmax.f32 %v268, 0.0
  %v299 = vmax.f32 %v273, 0.0
  %v300 = vmax.f32 %v276, 0.0
  %v301 = vmax.f32 %v281, 0.0
  %v302 = vmax.f32 %v284, 0.0
  %v303 = vpack.c.bf16 %v288, %v287
  %v304 = vpack.c.bf16 %v290, %v289
  %v305 = vpack.c.bf16 %v292, %v291
  %v306 = vpack.c.bf16 %v294, %v293
  %v307 = vpack.c.bf16 %v296, %v295
  %v308 = vpack.c.bf16 %v298, %v297
  %v309 = vpack.c.bf16 %v300, %v299
  %v310 = vpack.c.bf16 %v302, %v301
  %v311 = vld [vmem:[%s3] sm:$0xf]
  %v312 = vld [vmem:[%s3 + $0x4] sm:$0xf]
  %v313 = vld [vmem:[%s3 + $0x8] sm:$0xf]
  %v314 = vld [vmem:[%s3 + $0xc] sm:$0xf]
  %v315 = vld [vmem:[%s3 + $0x10] sm:$0xf]
  %v316 = vld [vmem:[%s3 + $0x14] sm:$0xf]
  %v317 = vld [vmem:[%s3 + $0x18] sm:$0xf]
  %v318 = vld [vmem:[%s3 + $0x1c] sm:$0xf]
  %v319 = vld [vmem:[%s3 + $0x20] sm:$0xf]
  %v320 = vld [vmem:[%s3 + $0x24] sm:$0xf]
  %v321 = vld [vmem:[%s3 + $0x28] sm:$0xf]
  %v322 = vld [vmem:[%s3 + $0x2c] sm:$0xf]
  %v323 = vld [vmem:[%s3 + $0x30] sm:$0xf]
  %v324 = vld [vmem:[%s3 + $0x34] sm:$0xf]
  %v325 = vld [vmem:[%s3 + $0x38] sm:$0xf]
  %v326 = vld [vmem:[%s3 + $0x3c] sm:$0xf]
  %v327 = vld [vmem:[%s4] sm:$0x1]
  %v329 = vlaneseq
  %v330 = vshrl.u32 %v329, 7
  %v331 = vsub.s32 0, %v330
  %v332 = vrot.slane %v327, %v331
  %v350 = vunpack.c.l.b16 %v311
  %v351 = vunpack.c.l.b16 %v312
  %v352 = vunpack.c.l.b16 %v313
  %v353 = vunpack.c.l.b16 %v314
  %v354 = vunpack.c.l.b16 %v315
  %v355 = vunpack.c.l.b16 %v316
  %v356 = vunpack.c.l.b16 %v317
  %v357 = vunpack.c.l.b16 %v318
  %v358 = vunpack.c.l.b16 %v319
  %v359 = vunpack.c.l.b16 %v320
  %v360 = vunpack.c.l.b16 %v321
  %v361 = vunpack.c.l.b16 %v322
  %v362 = vunpack.c.l.b16 %v323
  %v363 = vunpack.c.l.b16 %v324
  %v364 = vunpack.c.l.b16 %v325
  %v365 = vunpack.c.l.b16 %v326
  %v366 = vpack.c.b16 %v351, %v350
  %v367 = vpack.c.b16 %v353, %v352
  %v368 = vpack.c.b16 %v355, %v354
  %v369 = vpack.c.b16 %v357, %v356
  %v370 = vpack.c.b16 %v359, %v358
  %v371 = vpack.c.b16 %v361, %v360
  %v372 = vpack.c.b16 %v363, %v362
  %v373 = vpack.c.b16 %v365, %v364
  %382 = vmatprep.subr.bf16.mxu0 0
  %383 = vmatpush1.bf16.msra.mxu0 %v366
  %384 = vmatprep.subr.bf16.mxu0 0
  %385 = vmatpush1.bf16.msra.mxu0 %v367
  %386 = vmatprep.subr.bf16.mxu0 0
  %387 = vmatpush1.bf16.msra.mxu0 %v368
  %388 = vmatprep.subr.bf16.mxu0 0
  %389 = vmatpush1.bf16.msra.mxu0 %v369
  %390 = vmatprep.subr.bf16.mxu0 0
  %391 = vmatpush1.bf16.msra.mxu0 %v370
  %392 = vmatprep.subr.bf16.mxu0 0
  %393 = vmatpush1.bf16.msra.mxu0 %v371
  %394 = vmatprep.subr.bf16.mxu0 0
  %395 = vmatpush1.bf16.msra.mxu0 %v372
  %396 = vmatprep.subr.bf16.mxu0 0
  %397 = vmatpush1.bf16.msra.mxu0 %v373
  %398 = vmatprep.subr.bf16.mxu0 0
  %399 = vmatpush1.bf16.msra.mxu0 0
  %400 = vmatprep.subr.bf16.mxu0 0
  %401 = vmatpush1.bf16.msra.mxu0 0
  %402 = vmatprep.subr.bf16.mxu0 0
  %403 = vmatpush1.bf16.msra.mxu0 0
  %404 = vmatprep.subr.bf16.mxu0 0
  %405 = vmatpush1.bf16.msra.mxu0 0
  %406 = vmatprep.subr.bf16.mxu0 0
  %407 = vmatpush1.bf16.msra.mxu0 0
  %408 = vmatprep.subr.bf16.mxu0 0
  %409 = vmatpush1.bf16.msra.mxu0 0
  %410 = vmatprep.subr.bf16.mxu0 0
  %411 = vmatpush1.bf16.msra.mxu0 0
  %412 = vmatprep.subr.bf16.mxu0 0
  %413 = vmatpush1.bf16.msra.mxu0 0
  %414 = vmatprep.mubr.bf16.mxu0 0
  %415 = vmatmul.mubr.bf16.gmra.mrb[0].mxu0 %v303
  %v416 = vpop.f32.mrb[0].mxu0
  %v417 = vadd.f32 %v332, %v416
  %v418 = vpop.f32.mrb[0].mxu0
  %v419 = vpop.f32.mrb[0].mxu0
  %v420 = vadd.f32 %v332, %v419
  %v421 = vpop.f32.mrb[0].mxu0
  %422 = vmatprep.mubr.bf16.mxu0 0
  %423 = vmatmul.mubr.bf16.gmra.mrb[0].mxu0 %v304
  %v424 = vpop.f32.mrb[0].mxu0
  %v425 = vadd.f32 %v332, %v424
  %v426 = vpop.f32.mrb[0].mxu0
  %v427 = vpop.f32.mrb[0].mxu0
  %v428 = vadd.f32 %v332, %v427
  %v429 = vpop.f32.mrb[0].mxu0
  %430 = vmatprep.mubr.bf16.mxu0 0
  %431 = vmatmul.mubr.bf16.gmra.mrb[0].mxu0 %v305
  %v432 = vpop.f32.mrb[0].mxu0
  %v433 = vadd.f32 %v332, %v432
  %v434 = vpop.f32.mrb[0].mxu0
  %v435 = vpop.f32.mrb[0].mxu0
  %v436 = vadd.f32 %v332, %v435
  %v437 = vpop.f32.mrb[0].mxu0
  %438 = vmatprep.mubr.bf16.mxu0 0
  %439 = vmatmul.mubr.bf16.gmra.mrb[0].mxu0 %v306
  %v440 = vpop.f32.mrb[0].mxu0
  %v441 = vadd.f32 %v332, %v440
  %v442 = vpop.f32.mrb[0].mxu0
  %v443 = vpop.f32.mrb[0].mxu0
  %v444 = vadd.f32 %v332, %v443
  %v445 = vpop.f32.mrb[0].mxu0
  %446 = vmatprep.mubr.bf16.mxu0 0
  %447 = vmatmul.mubr.bf16.gmra.mrb[0].mxu0 %v307
  %v448 = vpop.f32.mrb[0].mxu0
  %v449 = vadd.f32 %v332, %v448
  %v450 = vpop.f32.mrb[0].mxu0
  %v451 = vpop.f32.mrb[0].mxu0
  %v452 = vadd.f32 %v332, %v451
  %v453 = vpop.f32.mrb[0].mxu0
  %454 = vmatprep.mubr.bf16.mxu0 0
  %455 = vmatmul.mubr.bf16.gmra.mrb[0].mxu0 %v308
  %v456 = vpop.f32.mrb[0].mxu0
  %v457 = vadd.f32 %v332, %v456
  %v458 = vpop.f32.mrb[0].mxu0
  %v459 = vpop.f32.mrb[0].mxu0
  %v460 = vadd.f32 %v332, %v459
  %v461 = vpop.f32.mrb[0].mxu0
  %462 = vmatprep.mubr.bf16.mxu0 0
  %463 = vmatmul.mubr.bf16.gmra.mrb[0].mxu0 %v309
  %v464 = vpop.f32.mrb[0].mxu0
  %v465 = vadd.f32 %v332, %v464
  %v466 = vpop.f32.mrb[0].mxu0
  %v467 = vpop.f32.mrb[0].mxu0
  %v468 = vadd.f32 %v332, %v467
  %v469 = vpop.f32.mrb[0].mxu0
  %470 = vmatprep.mubr.bf16.mxu0 0
  %471 = vmatmul.mubr.bf16.gmra.mrb[0].mxu0 %v310
  %v472 = vpop.f32.mrb[0].mxu0
  %v473 = vadd.f32 %v332, %v472
  %v474 = vpop.f32.mrb[0].mxu0
  %v475 = vpop.f32.mrb[0].mxu0
  %v476 = vadd.f32 %v332, %v475
  %v477 = vpop.f32.mrb[0].mxu0
  %478 = vdwg.mxu0
  %v479 = vmax.f32 %v417, 0.0
  %v480 = vmax.f32 %v420, 0.0
  %v481 = vmax.f32 %v425, 0.0
  %v482 = vmax.f32 %v428, 0.0
  %v483 = vmax.f32 %v433, 0.0
  %v484 = vmax.f32 %v436, 0.0
  %v485 = vmax.f32 %v441, 0.0
  %v486 = vmax.f32 %v444, 0.0
  %v487 = vmax.f32 %v449, 0.0
  %v488 = vmax.f32 %v452, 0.0
  %v489 = vmax.f32 %v457, 0.0
  %v490 = vmax.f32 %v460, 0.0
  %v491 = vmax.f32 %v465, 0.0
  %v492 = vmax.f32 %v468, 0.0
  %v493 = vmax.f32 %v473, 0.0
  %v494 = vmax.f32 %v476, 0.0
  %v495 = vpack.c.bf16 %v480, %v479
  %v496 = vpack.c.bf16 %v482, %v481
  %v497 = vpack.c.bf16 %v484, %v483
  %v498 = vpack.c.bf16 %v486, %v485
  %v499 = vpack.c.bf16 %v488, %v487
  %v500 = vpack.c.bf16 %v490, %v489
  %v501 = vpack.c.bf16 %v492, %v491
  %v502 = vpack.c.bf16 %v494, %v493
  %v503 = vld [vmem:[%s5] sm:$0xf]
  %v504 = vld [vmem:[%s5 + $0x4] sm:$0xf]
  %v505 = vld [vmem:[%s5 + $0x8] sm:$0xf]
  %v506 = vld [vmem:[%s5 + $0xc] sm:$0xf]
  %v507 = vld [vmem:[%s5 + $0x10] sm:$0xf]
  %v508 = vld [vmem:[%s5 + $0x14] sm:$0xf]
  %v509 = vld [vmem:[%s5 + $0x18] sm:$0xf]
  %v510 = vld [vmem:[%s5 + $0x1c] sm:$0xf]
  %v511 = vld [vmem:[%s5 + $0x20] sm:$0xf]
  %v512 = vld [vmem:[%s5 + $0x24] sm:$0xf]
  %v513 = vld [vmem:[%s5 + $0x28] sm:$0xf]
  %v514 = vld [vmem:[%s5 + $0x2c] sm:$0xf]
  %v515 = vld [vmem:[%s5 + $0x30] sm:$0xf]
  %v516 = vld [vmem:[%s5 + $0x34] sm:$0xf]
  %v517 = vld [vmem:[%s5 + $0x38] sm:$0xf]
  %v518 = vld [vmem:[%s5 + $0x3c] sm:$0xf]
  %v519 = vld [vmem:[%s6] sm:$0x1]
  %v521 = vlaneseq
  %v522 = vshrl.u32 %v521, 7
  %v523 = vsub.s32 0, %v522
  %v524 = vrot.slane %v519, %v523
  %v542 = vunpack.c.l.b16 %v503
  %v543 = vunpack.c.l.b16 %v504
  %v544 = vunpack.c.l.b16 %v505
  %v545 = vunpack.c.l.b16 %v506
  %v546 = vunpack.c.l.b16 %v507
  %v547 = vunpack.c.l.b16 %v508
  %v548 = vunpack.c.l.b16 %v509
  %v549 = vunpack.c.l.b16 %v510
  %v550 = vunpack.c.l.b16 %v511
  %v551 = vunpack.c.l.b16 %v512
  %v552 = vunpack.c.l.b16 %v513
  %v553 = vunpack.c.l.b16 %v514
  %v554 = vunpack.c.l.b16 %v515
  %v555 = vunpack.c.l.b16 %v516
  %v556 = vunpack.c.l.b16 %v517
  %v557 = vunpack.c.l.b16 %v518
  %v558 = vpack.c.b16 %v543, %v542
  %v559 = vpack.c.b16 %v545, %v544
  %v560 = vpack.c.b16 %v547, %v546
  %v561 = vpack.c.b16 %v549, %v548
  %v562 = vpack.c.b16 %v551, %v550
  %v563 = vpack.c.b16 %v553, %v552
  %v564 = vpack.c.b16 %v555, %v554
  %v565 = vpack.c.b16 %v557, %v556
  %574 = vmatprep.subr.bf16.mxu0 0
  %575 = vmatpush1.bf16.msra.mxu0 %v558
  %576 = vmatprep.subr.bf16.mxu0 0
  %577 = vmatpush1.bf16.msra.mxu0 %v559
  %578 = vmatprep.subr.bf16.mxu0 0
  %579 = vmatpush1.bf16.msra.mxu0 %v560
  %580 = vmatprep.subr.bf16.mxu0 0
  %581 = vmatpush1.bf16.msra.mxu0 %v561
  %582 = vmatprep.subr.bf16.mxu0 0
  %583 = vmatpush1.bf16.msra.mxu0 %v562
  %584 = vmatprep.subr.bf16.mxu0 0
  %585 = vmatpush1.bf16.msra.mxu0 %v563
  %586 = vmatprep.subr.bf16.mxu0 0
  %587 = vmatpush1.bf16.msra.mxu0 %v564
  %588 = vmatprep.subr.bf16.mxu0 0
  %589 = vmatpush1.bf16.msra.mxu0 %v565
  %590 = vmatprep.subr.bf16.mxu0 0
  %591 = vmatpush1.bf16.msra.mxu0 0
  %592 = vmatprep.subr.bf16.mxu0 0
  %593 = vmatpush1.bf16.msra.mxu0 0
  %594 = vmatprep.subr.bf16.mxu0 0
  %595 = vmatpush1.bf16.msra.mxu0 0
  %596 = vmatprep.subr.bf16.mxu0 0
  %597 = vmatpush1.bf16.msra.mxu0 0
  %598 = vmatprep.subr.bf16.mxu0 0
  %599 = vmatpush1.bf16.msra.mxu0 0
  %600 = vmatprep.subr.bf16.mxu0 0
  %601 = vmatpush1.bf16.msra.mxu0 0
  %602 = vmatprep.subr.bf16.mxu0 0
  %603 = vmatpush1.bf16.msra.mxu0 0
  %604 = vmatprep.subr.bf16.mxu0 0
  %605 = vmatpush1.bf16.msra.mxu0 0
  %606 = vmatprep.mubr.bf16.mxu0 0
  %607 = vmatmul.mubr.bf16.gmra.mrb[0].mxu0 %v495
  %v608 = vpop.f32.mrb[0].mxu0
  %v609 = vadd.f32 %v524, %v608
  %v610 = vpop.f32.mrb[0].mxu0
  %v611 = vpop.f32.mrb[0].mxu0
  %v612 = vadd.f32 %v524, %v611
  %v613 = vpop.f32.mrb[0].mxu0
  %614 = vmatprep.mubr.bf16.mxu0 0
  %615 = vmatmul.mubr.bf16.gmra.mrb[0].mxu0 %v496
  %v616 = vpop.f32.mrb[0].mxu0
  %v617 = vadd.f32 %v524, %v616
  %v618 = vpop.f32.mrb[0].mxu0
  %v619 = vpop.f32.mrb[0].mxu0
  %v620 = vadd.f32 %v524, %v619
  %v621 = vpop.f32.mrb[0].mxu0
  %622 = vmatprep.mubr.bf16.mxu0 0
  %623 = vmatmul.mubr.bf16.gmra.mrb[0].mxu0 %v497
  %v624 = vpop.f32.mrb[0].mxu0
  %v625 = vadd.f32 %v524, %v624
  %v626 = vpop.f32.mrb[0].mxu0
  %v627 = vpop.f32.mrb[0].mxu0
  %v628 = vadd.f32 %v524, %v627
  %v629 = vpop.f32.mrb[0].mxu0
  %630 = vmatprep.mubr.bf16.mxu0 0
  %631 = vmatmul.mubr.bf16.gmra.mrb[0].mxu0 %v498
  %v632 = vpop.f32.mrb[0].mxu0
  %v633 = vadd.f32 %v524, %v632
  %v634 = vpop.f32.mrb[0].mxu0
  %v635 = vpop.f32.mrb[0].mxu0
  %v636 = vadd.f32 %v524, %v635
  %v637 = vpop.f32.mrb[0].mxu0
  %638 = vmatprep.mubr.bf16.mxu0 0
  %639 = vmatmul.mubr.bf16.gmra.mrb[0].mxu0 %v499
  %v640 = vpop.f32.mrb[0].mxu0
  %v641 = vadd.f32 %v524, %v640
  %v642 = vpop.f32.mrb[0].mxu0
  %v643 = vpop.f32.mrb[0].mxu0
  %v644 = vadd.f32 %v524, %v643
  %v645 = vpop.f32.mrb[0].mxu0
  %646 = vmatprep.mubr.bf16.mxu0 0
  %647 = vmatmul.mubr.bf16.gmra.mrb[0].mxu0 %v500
  %v648 = vpop.f32.mrb[0].mxu0
  %v649 = vadd.f32 %v524, %v648
  %v650 = vpop.f32.mrb[0].mxu0
  %v651 = vpop.f32.mrb[0].mxu0
  %v652 = vadd.f32 %v524, %v651
  %v653 = vpop.f32.mrb[0].mxu0
  %654 = vmatprep.mubr.bf16.mxu0 0
  %655 = vmatmul.mubr.bf16.gmra.mrb[0].mxu0 %v501
  %v656 = vpop.f32.mrb[0].mxu0
  %v657 = vadd.f32 %v524, %v656
  %v658 = vpop.f32.mrb[0].mxu0
  %v659 = vpop.f32.mrb[0].mxu0
  %v660 = vadd.f32 %v524, %v659
  %v661 = vpop.f32.mrb[0].mxu0
  %662 = vmatprep.mubr.bf16.mxu0 0
  %663 = vmatmul.mubr.bf16.gmra.mrb[0].mxu0 %v502
  %v664 = vpop.f32.mrb[0].mxu0
  %v665 = vadd.f32 %v524, %v664
  %v666 = vpop.f32.mrb[0].mxu0
  %v667 = vpop.f32.mrb[0].mxu0
  %v668 = vadd.f32 %v524, %v667
  %v669 = vpop.f32.mrb[0].mxu0
  %670 = vdwg.mxu0
  %v671 = vmax.f32 %v609, 0.0
  %v672 = vmax.f32 %v612, 0.0
  %v673 = vmax.f32 %v617, 0.0
  %v674 = vmax.f32 %v620, 0.0
  %v675 = vmax.f32 %v625, 0.0
  %v676 = vmax.f32 %v628, 0.0
  %v677 = vmax.f32 %v633, 0.0
  %v678 = vmax.f32 %v636, 0.0
  %v679 = vmax.f32 %v641, 0.0
  %v680 = vmax.f32 %v644, 0.0
  %v681 = vmax.f32 %v649, 0.0
  %v682 = vmax.f32 %v652, 0.0
  %v683 = vmax.f32 %v657, 0.0
  %v684 = vmax.f32 %v660, 0.0
  %v685 = vmax.f32 %v665, 0.0
  %v686 = vmax.f32 %v668, 0.0
  %v687 = vpack.c.bf16 %v672, %v671
  %v688 = vpack.c.bf16 %v674, %v673
  %v689 = vpack.c.bf16 %v676, %v675
  %v690 = vpack.c.bf16 %v678, %v677
  %v691 = vpack.c.bf16 %v680, %v679
  %v692 = vpack.c.bf16 %v682, %v681
  %v693 = vpack.c.bf16 %v684, %v683
  %v694 = vpack.c.bf16 %v686, %v685
  %v695 = vld [vmem:[%s7] sm:$0xf]
  %vm696 = vcmask 523264
  %v698 = vsel %vm696, %v695, 0
  %v701 = vsel %vm696, %v687, 0
  %v704 = vsel %vm696, %v688, 0
  %v707 = vsel %vm696, %v689, 0
  %v710 = vsel %vm696, %v690, 0
  %v713 = vsel %vm696, %v691, 0
  %v716 = vsel %vm696, %v692, 0
  %v719 = vsel %vm696, %v693, 0
  %v722 = vsel %vm696, %v694, 0
  %724 = vmatprep.subr.bf16.mxu0 0
  %725 = vmatpush1.bf16.xpose.msra.mxu0 %v701
  %726 = vmatprep.subr.bf16.mxu0 0
  %727 = vmatpush1.bf16.xpose.msra.mxu0 %v704
  %728 = vmatprep.subr.bf16.mxu0 0
  %729 = vmatpush1.bf16.xpose.msra.mxu0 %v707
  %730 = vmatprep.subr.bf16.mxu0 0
  %731 = vmatpush1.bf16.xpose.msra.mxu0 %v710
  %732 = vmatprep.subr.bf16.mxu0 0
  %733 = vmatpush1.bf16.xpose.msra.mxu0 %v713
  %734 = vmatprep.subr.bf16.mxu0 0
  %735 = vmatpush1.bf16.xpose.msra.mxu0 %v716
  %736 = vmatprep.subr.bf16.mxu0 0
  %737 = vmatpush1.bf16.xpose.msra.mxu0 %v719
  %738 = vmatprep.subr.bf16.mxu0 0
  %739 = vmatpush1.bf16.xpose.msra.mxu0 %v722
  %740 = vmatprep.subr.bf16.mxu0 0
  %741 = vmatpush1.bf16.xpose.msra.mxu0 0
  %742 = vmatprep.subr.bf16.mxu0 0
  %743 = vmatpush1.bf16.xpose.msra.mxu0 0
  %744 = vmatprep.subr.bf16.mxu0 0
  %745 = vmatpush1.bf16.xpose.msra.mxu0 0
  %746 = vmatprep.subr.bf16.mxu0 0
  %747 = vmatpush1.bf16.xpose.msra.mxu0 0
  %748 = vmatprep.subr.bf16.mxu0 0
  %749 = vmatpush1.bf16.xpose.msra.mxu0 0
  %750 = vmatprep.subr.bf16.mxu0 0
  %751 = vmatpush1.bf16.xpose.msra.mxu0 0
  %752 = vmatprep.subr.bf16.mxu0 0
  %753 = vmatpush1.bf16.xpose.msra.mxu0 0
  %754 = vmatprep.subr.bf16.mxu0 0
  %755 = vmatpush1.bf16.xpose.msra.mxu0 0
  %756 = vmatprep.mubr.bf16.mxu0 0
  %757 = vmatmul.mubr.bf16.gmra.mrb[0].mxu0 %v698
  %v758 = vpop.f32.mrb[0].mxu0
  %v759 = vadd.f32 0.0, %v758
  %v760 = vpop.f32.mrb[0].mxu0
  %v761 = vpop.f32.mrb[0].mxu0
  %v762 = vpop.f32.mrb[0].mxu0
  %763 = vdwg.mxu0
  %v764 = vld [vmem:[#allocation2] sm:$0x1]
  %766 = vset.pattern.permute.xlu0 0
  %767 = vperm.xlu0 %766, %v764
  %v768 = vpop.permute.xlu0 %767
  %v770 = vlaneseq
  %v771 = vshrl.u32 %v770, 7
  %v772 = vsub.s32 0, %v771
  %v773 = vrot.slane %v768, %v772
  %v774 = vadd.f32 %v759, %v773
  %775 = vst [vmem:[%s9] sm:$0x1] %v774
  // Predicated region
  $region38: #{discriminator_forward.1} parent=0 // pred_check
    _
  $region39: #{discriminator_forward.1} parent=0 // pred_check_branch
    %777 = sbr.rel (0) target = $region41
  $region40: #{discriminator_forward.1} parent=0 // pred_region
    _
  $region41: #{discriminator_forward.1} parent=0 // pred_fallthru
    _
  // Predicated region
  $region42: #{discriminator_forward.1} parent=0 // pred_check
    _
  $region43: #{discriminator_forward.1} parent=0 // pred_check_branch
    %779 = sbr.rel (0) target = $region45
  $region44: #{discriminator_forward.1} parent=0 // pred_region
    _
  $region45: #{discriminator_forward.1} parent=0 // pred_fallthru
    _

</llo_original>
